<compile_context>
chip_gen: v7x
topology: tpu7x:2x2x1
jax: 0.10.0
libtpu: 0.0.40
codegen_flags: <defaults>
</compile_context>

<pallas_src>
import functools

import jax
import jax.numpy as jnp
from jax.experimental import pallas as pl
from jax.experimental.pallas import tpu as pltpu


# ---------------------------------------------------------------------------
# Hardware-aware sizing helpers
# ---------------------------------------------------------------------------

@functools.lru_cache(maxsize=1)
def _vmem_capacity_bytes():
    """Per-core VMEM capacity; conservative fallback is v7x's 64 MiB."""
    try:
        cap = int(pltpu.get_tpu_info().vmem_capacity_bytes)
        if cap > 0:
            return cap
    except Exception:
        pass
    try:
        kind = jax.devices()[0].device_kind.lower()
        if any(t in kind for t in ("v5 lite", "v5e", "v5litepod", "v6")):
            return 128 * 1024 * 1024
    except Exception:
        pass
    return 64 * 1024 * 1024


@functools.lru_cache(maxsize=1)
def _is_v5e():
    try:
        kind = jax.devices()[0].device_kind.lower()
        return ("v5 lite" in kind) or ("v5e" in kind) or ("v5litepod" in kind)
    except Exception:
        return False


def _pick_time_tile(T, per_tt_bytes, avail_bytes, cap=2048):
    """Largest lane-dense time tile whose pipelined buffers fit the budget."""
    if T <= 128:
        return T                                  # full extent (exempt from 128-rule)
    fit = int(avail_bytes // max(per_tt_bytes, 1))
    if fit >= T and T % 128 == 0 and T <= cap:
        return T                                  # whole T, already lane-dense
    tt = min(fit, cap, T)
    tt = max(128, (tt // 128) * 128)              # multiple of 128; last tile may be ragged
    return tt


# ---------------------------------------------------------------------------
# Parameter preparation (do this ONCE, not per forward call)
# ---------------------------------------------------------------------------

def prepare_weights(weights):
    """One-time layout change (S, C, D) -> (S, D, C).

    Call at init / parameter-load time. The kernel is HBM-bound, so a per-call
    transpose would re-read + re-write the whole weight tensor every forward.
    """
    return jnp.swapaxes(weights, 1, 2)


# ---------------------------------------------------------------------------
# Kernels
# ---------------------------------------------------------------------------

def _resident_kernel(subj_ref, w_ref, x_ref, o_ref, *, bb):
    # subj_ref: SMEM (B_pad,) int32 (scalar prefetch)
    # w_ref:    VMEM (S, D, C)  -- whole weight tensor, resident across the grid
    # x_ref:    VMEM (bb, C, tt)
    # o_ref:    VMEM (bb, D, tt)
    b0 = pl.program_id(0) * bb
    for i in range(bb):                        # static unroll over the batch block
        s = subj_ref[b0 + i]
        o_ref[i] = jnp.dot(
            w_ref[s], x_ref[i], preferred_element_type=jnp.float32
        ).astype(o_ref.dtype)


def _gather_kernel(subj_ref, order_ref, w_ref, x_ref, o_ref):
    # w_ref: VMEM (1, D, C) = weights_t[subjects[order[b]]] (gathered via index_map)
    # x_ref: VMEM (1, C, tt); o_ref: VMEM (1, D, tt)
    del subj_ref, order_ref
    o_ref[0] = jnp.dot(
        w_ref[0], x_ref[0], preferred_element_type=jnp.float32
    ).astype(o_ref.dtype)


# ---------------------------------------------------------------------------
# Forward wrapper
# ---------------------------------------------------------------------------

def subject_layers(x, subjects, weights_t, *, time_tile=None, batch_block=None,
                   force_gather=False):
    """x: (B, C, T), subjects: (B,) int, weights_t: (S, D, C) -> (B, D, T).

    `weights_t` must be the pre-transposed parameter (see `prepare_weights`).
    """
    B, C, T = x.shape
    S, D, Cw = weights_t.shape
    assert C == Cw, (C, Cw)

    # Guard: an out-of-range subject id would otherwise become an OOB DMA /
    # VMEM index. Clipping a (B,)-sized vector is essentially free.
    subjects = jnp.clip(subjects.astype(jnp.int32), 0, S - 1)

    x_item = jnp.dtype(x.dtype).itemsize
    w_item = jnp.dtype(weights_t.dtype).itemsize
    o_item = x_item

    cap = _vmem_capacity_bytes()
    vmem_limit = min(int(cap * 0.70), 100 * 1024 * 1024)
    tile_budget = int(vmem_limit * 0.85)
    n_xbuf = 3 if _is_v5e() else 2            # deeper x pipeline on v5e (lowest HBM BW)
    x_spec_kwargs = {"pipeline_mode": pl.Buffered(3)} if _is_v5e() else {}

    weight_resident_bytes = 2 * S * D * C * w_item   # double-buffer allowance
    use_resident = (not force_gather) and weight_resident_bytes <= tile_budget // 2

    if time_tile is not None:
        assert int(time_tile) == T or int(time_tile) % 128 == 0, (
            "time_tile must be lane-dense (multiple of 128) or the full T extent")

    if use_resident:
        # ---- Main path: whole weight tensor resident in VMEM, BB batch
        # ---- elements per grid step.
        bb = int(batch_block) if batch_block is not None else max(1, min(8, B))
        num_b = pl.cdiv(B, bb)
        b_pad = num_b * bb
        subj_arr = subjects if b_pad == B else jnp.pad(subjects, (0, b_pad - B))

        # Per-unit-of-tt VMEM bytes: x tiles + out tiles + f32 intermediates.
        per_tt = n_xbuf * bb * C * x_item + 2 * bb * D * o_item + 2 * D * 4
        avail = max(tile_budget - weight_resident_bytes, per_tt * 128)
        tt = int(time_tile) if time_tile is not None else _pick_time_tile(T, per_tt, avail)
        if time_tile is None and num_b == 1 and T >= 256:
            # Keep >=2 time blocks so both v7x TensorCores get work.
            tt = min(tt, max(128, ((T // 2) // 128) * 128))
        num_t = pl.cdiv(T, tt)

        grid_spec = pltpu.PrefetchScalarGridSpec(
            num_scalar_prefetch=1,
            grid=(num_b, num_t),
            in_specs=[
                # Whole weight tensor; constant block index -> DMA'd once and
                # kept resident for the entire grid.
                pl.BlockSpec((S, D, C), lambda b, t, subj: (0, 0, 0)),
                pl.BlockSpec((bb, C, tt), lambda b, t, subj: (b, 0, t),
                             **x_spec_kwargs),
            ],
            out_specs=pl.BlockSpec((bb, D, tt), lambda b, t, subj: (b, 0, t)),
        )
        kernel = functools.partial(_resident_kernel, bb=bb)
        operands = (subj_arr, weights_t, x)
        bytes_accessed = B * C * T * x_item + B * D * T * o_item + S * D * C * w_item
        dim_sem = ("parallel", "parallel")   # every (b, t) block written exactly once
    else:
        # ---- Fallback: weights too large for VMEM residency. Gather one
        # ---- (D, C) tile per batch element; iterate batches in subject-sorted
        # ---- order (index_map permutation only) so equal-subject neighbours
        # ---- skip the weight DMA.
        order = jnp.argsort(subjects).astype(jnp.int32)
        subj_sorted = jnp.take(subjects, order)

        per_tt = n_xbuf * C * x_item + 2 * D * o_item + 2 * D * 4
        avail = max(tile_budget - 2 * D * C * w_item, per_tt * 128)
        tt = int(time_tile) if time_tile is not None else _pick_time_tile(T, per_tt, avail)
        num_t = pl.cdiv(T, tt)

        grid_spec = pltpu.PrefetchScalarGridSpec(
            num_scalar_prefetch=2,
            grid=(B, num_t),                 # t innermost: weight block reused across t
            in_specs=[
                pl.BlockSpec((1, D, C), lambda b, t, ss, od: (ss[b], 0, 0)),
                pl.BlockSpec((1, C, tt), lambda b, t, ss, od: (od[b], 0, t),
                             **x_spec_kwargs),
            ],
            out_specs=pl.BlockSpec((1, D, tt), lambda b, t, ss, od: (od[b], 0, t)),
        )
        kernel = _gather_kernel
        operands = (subj_sorted, order, weights_t, x)
        bytes_accessed = B * C * T * x_item + B * D * T * o_item + B * D * C * w_item
        # t kept "arbitrary" so per-core sequential t preserves the weight
        # DMA-skip across time tiles (v7x megacore shards along b).
        dim_sem = ("parallel", "arbitrary")

    return pl.pallas_call(
        kernel,
        out_shape=jax.ShapeDtypeStruct((B, D, T), x.dtype),
        grid_spec=grid_spec,
        compiler_params=pltpu.CompilerParams(
            dimension_semantics=dim_sem,
            vmem_limit_bytes=vmem_limit,
        ),
        cost_estimate=pl.CostEstimate(
            flops=2 * B * D * C * T,
            transcendentals=0,
            bytes_accessed=int(bytes_accessed),
        ),
    )(*operands)


def subject_layers_forward(x, subjects, weights, **kw):
    """Convenience wrapper taking the original (S, C, D) parameter layout.

    Prefer calling `prepare_weights` once and `subject_layers` in the training
    loop; this wrapper pays the weight transpose on every call.
    """
    return subject_layers(x, subjects, prepare_weights(weights), **kw)


# ---------------------------------------------------------------------------
# Self-test
# ---------------------------------------------------------------------------

if __name__ == "__main__":
    key = jax.random.PRNGKey(0)
    k_w, k_x, k_s, k_x2, k_x3, k_s3 = jax.random.split(key, 6)

    # Small shapes consistent with the module: B=2, C=4 in-channels,
    # D=8 out-channels, T=16 time steps, S=3 subjects.
    B, C, D, T, S = 2, 4, 8, 16, 3
    # Init mirrors __init__ (init_id=False): randn(S, C, D) / sqrt(C).
    weights = jax.random.normal(k_w, (S, C, D), dtype=jnp.float32) * (1.0 / C ** 0.5)
    w_t = prepare_weights(weights)            # one-time layout change (hoisted)
    x = jax.random.normal(k_x, (B, C, T), dtype=jnp.float32)
    subjects = jax.random.randint(k_s, (B,), 0, S, dtype=jnp.int32)

    ref = jnp.einsum("bct,bcd->bdt", x, weights[subjects])
    out = jax.block_until_ready(subject_layers(x, subjects, w_t))
    assert out.shape == (B, D, T)
    assert jnp.allclose(out, ref, atol=1e-5, rtol=1e-5)

    # Tiled-T + ragged batch block: lane-dense 128-wide time tiles and a
    # masked last batch block (B=3 with batch_block=2 -> one padded row).
    B2, T2 = 3, 256
    x2 = jax.random.normal(k_x2, (B2, C, T2), dtype=jnp.float32)
    subjects2 = jax.random.randint(k_s, (B2,), 0, S, dtype=jnp.int32)
    ref2 = jnp.einsum("bct,bcd->bdt", x2, weights[subjects2])
    out2 = jax.block_until_ready(
        subject_layers(x2, subjects2, w_t, time_tile=128, batch_block=2))
    assert out2.shape == (B2, D, T2)
    assert jnp.allclose(out2, ref2, atol=1e-5, rtol=1e-5)

    # Fallback gather path (subject-sorted iteration order), forced so it is
    # exercised even though these weights easily fit in VMEM.
    B3 = 4
    x3 = jax.random.normal(k_x3, (B3, C, T2), dtype=jnp.float32)
    subjects3 = jax.random.randint(k_s3, (B3,), 0, S, dtype=jnp.int32)
    ref3 = jnp.einsum("bct,bcd->bdt", x3, weights[subjects3])
    out3 = jax.block_until_ready(
        subject_layers(x3, subjects3, w_t, time_tile=128, force_gather=True))
    assert out3.shape == (B3, D, T2)
    assert jnp.allclose(out3, ref3, atol=1e-5, rtol=1e-5)

    print("KERNEL_OK")
</pallas_src>

<mosaic_0001>
module attributes {stable_mosaic.version = 11 : i64} {
  func.func @_resident_kernel(%arg0: i32, %arg1: i32, %arg2: memref<2xi32, #tpu.memory_space<smem>>, %arg3: memref<3x8x4xf32, #tpu.memory_space<vmem>>, %arg4: memref<2x4x16xf32, #tpu.memory_space<vmem>>, %arg5: memref<2x8x16xf32, #tpu.memory_space<vmem>>) attributes {dimension_semantics = [#tpu.dimension_semantics<parallel>, #tpu.dimension_semantics<parallel>], iteration_bounds = array<i64: 1, 1>, scalar_prefetch = 1 : i64, scratch_operands = 0 : i64, tpu.core_type = #tpu.core_type<tc>, window_params = [{pipeline_mode = #tpu.pipeline_mode<synchronous>, transform_indices = @transform_0, window_bounds = array<i64: 3, 8, 4>}, {transform_indices = @transform_1, window_bounds = array<i64: 2, 4, 16>}, {transform_indices = @transform_2, window_bounds = array<i64: 2, 8, 16>}]} {
    %c2_i32 = arith.constant 2 : i32
    %0 = arith.muli %arg0, %c2_i32 : i32
    %c0_i32 = arith.constant 0 : i32
    %1 = arith.addi %0, %c0_i32 : i32
    %2 = arith.index_cast %1 : i32 to index
    %3 = memref.load %arg2[%2] : memref<2xi32, #tpu.memory_space<smem>>
    %4 = arith.index_cast %3 : i32 to index
    %c0 = arith.constant 0 : index
    %c0_0 = arith.constant 0 : index
    %5 = vector.load %arg3[%4, %c0, %c0_0] : memref<3x8x4xf32, #tpu.memory_space<vmem>>, vector<1x8x4xf32>
    %6 = vector.shape_cast %5 : vector<1x8x4xf32> to vector<8x4xf32>
    %c0_1 = arith.constant 0 : index
    %c0_2 = arith.constant 0 : index
    %c0_3 = arith.constant 0 : index
    %7 = vector.load %arg4[%c0_1, %c0_2, %c0_3] : memref<2x4x16xf32, #tpu.memory_space<vmem>>, vector<1x4x16xf32>
    %8 = vector.shape_cast %7 : vector<1x4x16xf32> to vector<4x16xf32>
    %cst = arith.constant dense<0.000000e+00> : vector<8x16xf32>
    %9 = tpu.matmul %6, %8, %cst {dimension_numbers = #tpu.dot_dimension_numbers<[1], [0], [0], [1], [0, 0, 1, 1], [], []>} : vector<8x4xf32>, vector<4x16xf32>, vector<8x16xf32> -> vector<8x16xf32>
    %c0_4 = arith.constant 0 : index
    %c0_5 = arith.constant 0 : index
    %c0_6 = arith.constant 0 : index
    %10 = vector.load %arg5[%c0_4, %c0_5, %c0_6] : memref<2x8x16xf32, #tpu.memory_space<vmem>>, vector<1x8x16xf32>
    %11 = vector.shape_cast %10 : vector<1x8x16xf32> to vector<8x16xf32>
    %12 = vector.shape_cast %9 : vector<8x16xf32> to vector<1x8x16xf32>
    tpu.vector_store %arg5[%c0_4, %c0_5, %c0_6], %12 {strides = array<i32>} : memref<2x8x16xf32, #tpu.memory_space<vmem>>, vector<1x8x16xf32>,
    %c1_i32 = arith.constant 1 : i32
    %13 = arith.addi %0, %c1_i32 : i32
    %14 = arith.index_cast %13 : i32 to index
    %15 = memref.load %arg2[%14] : memref<2xi32, #tpu.memory_space<smem>>
    %16 = arith.index_cast %15 : i32 to index
    %c0_7 = arith.constant 0 : index
    %c0_8 = arith.constant 0 : index
    %17 = vector.load %arg3[%16, %c0_7, %c0_8] : memref<3x8x4xf32, #tpu.memory_space<vmem>>, vector<1x8x4xf32>
    %18 = vector.shape_cast %17 : vector<1x8x4xf32> to vector<8x4xf32>
    %c1 = arith.constant 1 : index
    %c0_9 = arith.constant 0 : index
    %c0_10 = arith.constant 0 : index
    %19 = vector.load %arg4[%c1, %c0_9, %c0_10] : memref<2x4x16xf32, #tpu.memory_space<vmem>>, vector<1x4x16xf32>
    %20 = vector.shape_cast %19 : vector<1x4x16xf32> to vector<4x16xf32>
    %cst_11 = arith.constant dense<0.000000e+00> : vector<8x16xf32>
    %21 = tpu.matmul %18, %20, %cst_11 {dimension_numbers = #tpu.dot_dimension_numbers<[1], [0], [0], [1], [0, 0, 1, 1], [], []>} : vector<8x4xf32>, vector<4x16xf32>, vector<8x16xf32> -> vector<8x16xf32>
    %c1_12 = arith.constant 1 : index
    %c0_13 = arith.constant 0 : index
    %c0_14 = arith.constant 0 : index
    %22 = vector.load %arg5[%c1_12, %c0_13, %c0_14] : memref<2x8x16xf32, #tpu.memory_space<vmem>>, vector<1x8x16xf32>
    %23 = vector.shape_cast %22 : vector<1x8x16xf32> to vector<8x16xf32>
    %24 = vector.shape_cast %21 : vector<8x16xf32> to vector<1x8x16xf32>
    tpu.vector_store %arg5[%c1_12, %c0_13, %c0_14], %24 {strides = array<i32>} : memref<2x8x16xf32, #tpu.memory_space<vmem>>, vector<1x8x16xf32>,
    return
  }
  func.func @transform_0(%arg0: i32, %arg1: i32, %arg2: memref<2xi32, #tpu.memory_space<smem>>) -> (i32, i32, i32) {
    %c0_i32 = arith.constant 0 : i32
    %c0_i32_0 = arith.constant 0 : i32
    %c0_i32_1 = arith.constant 0 : i32
    %c0_i32_2 = arith.constant 0 : i32
    return %c0_i32, %c0_i32_0, %c0_i32_1 : i32, i32, i32
  }
  func.func @transform_1(%arg0: i32, %arg1: i32, %arg2: memref<2xi32, #tpu.memory_space<smem>>) -> (i32, i32, i32) {
    %c0_i32 = arith.constant 0 : i32
    %c0_i32_0 = arith.constant 0 : i32
    return %arg0, %c0_i32, %arg1 : i32, i32, i32
  }
  func.func @transform_2(%arg0: i32, %arg1: i32, %arg2: memref<2xi32, #tpu.memory_space<smem>>) -> (i32, i32, i32) {
    %c0_i32 = arith.constant 0 : i32
    %c0_i32_0 = arith.constant 0 : i32
    return %arg0, %c0_i32, %arg1 : i32, i32, i32
  }
}

</mosaic_0001>

<llo_original>
// kernel: tpu_custom_call.1
$region0: #{tpu_custom_call.1}
  #allocation0 [shape = 'u32[]', space=smem, size = 0x4, offset = 0x4, fixed_abs, tag = 'smem constant byte address 0x4 - core index']
  #allocation1 [shape = 'u32[144,128]{1,0:T(1,128)}', space=vmem, size = 0x12000, scoped, tag = 'internal scratch']
  #allocation2 [shape = 's32[1]{0}', space=sflag, size = 0x4, scoped, tag = 'scoped memory for tpu_custom_call.1']
  #allocation3 [shape = 'u8[512]{0}', space=smem, size = 0x200, scoped, tag = 'prefetched SMEM operand 0']
  %s0 = inlined_call_operand.vmem [shape: s32[2], index: 0, kind: input, shape index: {}]
  %s1 = inlined_call_operand.vmem [shape: f32[3,8,4], index: 1, kind: input, shape index: {}]
  %s2 = inlined_call_operand.vmem [shape: f32[2,4,16], index: 2, kind: input, shape index: {}]
  %s3 = inlined_call_operand.hbm [shape: f32[2,8,16], index: 3, kind: output, shape index: {}]
  %s4 = sld [smem:[#allocation0]]
  $region18: #{tpu_custom_call.1} parent=0
    _
  %s6 = ssub.s32 1, %s4
  %s7 = scalar_select 0, %s6, %s4
  %s8 = sshll.u32 %s0, 4
  %s9 = int_to_ptr.vmem [resolvable:$true] %s8
  %11 = dma.vmem_to_smem %s9, 16, [#allocation3], [#allocation2]
  %12 = dma.done [#allocation2], 16
  %13 = sfence
  $region1: #{tpu_custom_call.1} parent=0
    #allocation4 [shape = 'u8[8192]{0}', space=vmem, size = 0x2000, scoped, tag = 'output window, operand 0, single buffered']
    #allocation5 [shape = 's32[1]{0}', space=sflag, size = 0x4, scoped, tag = 'scoped memory for tpu_custom_call.1']
    %14 = vsyncpa [#allocation5], 0
    // Predicated region
    $region2: #{tpu_custom_call.1} parent=1 // pred_check
      _
    $region3: #{tpu_custom_call.1} parent=1 // pred_check_branch
      %16 = sbr.rel (0) target = $region5
    $region4: #{tpu_custom_call.1} parent=1 // pred_region
      _
    $region5: #{tpu_custom_call.1} parent=1 // pred_fallthru
      _
    // Predicated region
    $region6: #{tpu_custom_call.1} parent=1 // pred_check
      _
    $region7: #{tpu_custom_call.1} parent=1 // pred_check_branch
      %18 = sbr.rel (0) target = $region9
    $region8: #{tpu_custom_call.1} parent=1 // pred_region
      _
    $region9: #{tpu_custom_call.1} parent=1 // pred_fallthru
      _
    %s19 = smul.u32 0, 2
    %s20 = sld [smem:[#allocation3 + %s19]]
    %s21 = smul.u32 %s20, 8
    %s22 = scalar_lea.vmem %s1, %s21
    %v23 = vld [vmem:[%s22] sm:$0xff]
    %v24 = vld [vmem:[%s2] sm:$0xf]
    %vm25 = vcmask 31744
    %v27 = vsel %vm25, %v23, 0
    %vm29 = vcmask 1043456
    %v31 = vsel %vm29, %v24, 0
    %33 = vmatprep.subr.mxu0 0.0
    %34 = vmatpush1.msra.mxu0 %v31
    %35 = vmatprep.subr.mxu0 0.0
    %36 = vmatpush1.msra.mxu0 0.0
    %37 = vmatprep.subr.mxu0 0.0
    %38 = vmatpush1.msra.mxu0 0.0
    %39 = vmatprep.subr.mxu0 0.0
    %40 = vmatpush1.msra.mxu0 0.0
    %41 = vmatprep.subr.mxu0 0.0
    %42 = vmatpush1.msra.mxu0 0.0
    %43 = vmatprep.subr.mxu0 0.0
    %44 = vmatpush1.msra.mxu0 0.0
    %45 = vmatprep.subr.mxu0 0.0
    %46 = vmatpush1.msra.mxu0 0.0
    %47 = vmatprep.subr.mxu0 0.0
    %48 = vmatpush1.msra.mxu0 0.0
    %49 = vmatprep.subr.mxu0 0.0
    %50 = vmatpush1.msra.mxu0 0.0
    %51 = vmatprep.subr.mxu0 0.0
    %52 = vmatpush1.msra.mxu0 0.0
    %53 = vmatprep.subr.mxu0 0.0
    %54 = vmatpush1.msra.mxu0 0.0
    %55 = vmatprep.subr.mxu0 0.0
    %56 = vmatpush1.msra.mxu0 0.0
    %57 = vmatprep.subr.mxu0 0.0
    %58 = vmatpush1.msra.mxu0 0.0
    %59 = vmatprep.subr.mxu0 0.0
    %60 = vmatpush1.msra.mxu0 0.0
    %61 = vmatprep.subr.mxu0 0.0
    %62 = vmatpush1.msra.mxu0 0.0
    %63 = vmatprep.subr.mxu0 0.0
    %64 = vmatpush1.msra.mxu0 0.0
    %65 = vmatprep.subr.mxu0 0.0
    %66 = vmatpush1.msra.mxu0 0.0
    %67 = vmatprep.subr.mxu0 0.0
    %68 = vmatpush1.msra.mxu0 0.0
    %69 = vmatprep.subr.mxu0 0.0
    %70 = vmatpush1.msra.mxu0 0.0
    %71 = vmatprep.subr.mxu0 0.0
    %72 = vmatpush1.msra.mxu0 0.0
    %73 = vmatprep.subr.mxu0 0.0
    %74 = vmatpush1.msra.mxu0 0.0
    %75 = vmatprep.subr.mxu0 0.0
    %76 = vmatpush1.msra.mxu0 0.0
    %77 = vmatprep.subr.mxu0 0.0
    %78 = vmatpush1.msra.mxu0 0.0
    %79 = vmatprep.subr.mxu0 0.0
    %80 = vmatpush1.msra.mxu0 0.0
    %81 = vmatprep.subr.mxu0 0.0
    %82 = vmatpush1.msra.mxu0 0.0
    %83 = vmatprep.subr.mxu0 0.0
    %84 = vmatpush1.msra.mxu0 0.0
    %85 = vmatprep.subr.mxu0 0.0
    %86 = vmatpush1.msra.mxu0 0.0
    %87 = vmatprep.subr.mxu0 0.0
    %88 = vmatpush1.msra.mxu0 0.0
    %89 = vmatprep.subr.mxu0 0.0
    %90 = vmatpush1.msra.mxu0 0.0
    %91 = vmatprep.subr.mxu0 0.0
    %92 = vmatpush1.msra.mxu0 0.0
    %93 = vmatprep.subr.mxu0 0.0
    %94 = vmatpush1.msra.mxu0 0.0
    %95 = vmatprep.subr.mxu0 0.0
    %96 = vmatpush1.msra.mxu0 0.0
    %97 = vmatprep.mubr.f32.mxu0 0.0
    %98 = vmatmul.mubr.f32.gmra.mrb[0].mxu0 %v27
    %v99 = vpop.f32.mrb[0].mxu0
    %v100 = vadd.f32 0.0, %v99
    %v101 = vpop.f32.mrb[0].mxu0
    %102 = vdwg.mxu0
    %vm103 = vcmask 130048
    %104 = vst.msk [vmem:[#allocation4] sm:$0xff] %vm103, %v100
    %s105 = sadd.s32 %s19, 1
    %s106 = sld [smem:[#allocation3 + %s105]]
    %s107 = smul.u32 %s106, 8
    %s108 = scalar_lea.vmem %s1, %s107
    %v109 = vld [vmem:[%s108] sm:$0xff]
    %s110 = scalar_lea.vmem %s2, 4
    %v111 = vld [vmem:[%s110] sm:$0xf]
    %v113 = vsel %vm25, %v109, 0
    %v116 = vsel %vm29, %v111, 0
    %118 = vmatprep.subr.mxu0 0.0
    %119 = vmatpush1.msra.mxu0 %v116
    %120 = vmatprep.subr.mxu0 0.0
    %121 = vmatpush1.msra.mxu0 0.0
    %122 = vmatprep.subr.mxu0 0.0
    %123 = vmatpush1.msra.mxu0 0.0
    %124 = vmatprep.subr.mxu0 0.0
    %125 = vmatpush1.msra.mxu0 0.0
    %126 = vmatprep.subr.mxu0 0.0
    %127 = vmatpush1.msra.mxu0 0.0
    %128 = vmatprep.subr.mxu0 0.0
    %129 = vmatpush1.msra.mxu0 0.0
    %130 = vmatprep.subr.mxu0 0.0
    %131 = vmatpush1.msra.mxu0 0.0
    %132 = vmatprep.subr.mxu0 0.0
    %133 = vmatpush1.msra.mxu0 0.0
    %134 = vmatprep.subr.mxu0 0.0
    %135 = vmatpush1.msra.mxu0 0.0
    %136 = vmatprep.subr.mxu0 0.0
    %137 = vmatpush1.msra.mxu0 0.0
    %138 = vmatprep.subr.mxu0 0.0
    %139 = vmatpush1.msra.mxu0 0.0
    %140 = vmatprep.subr.mxu0 0.0
    %141 = vmatpush1.msra.mxu0 0.0
    %142 = vmatprep.subr.mxu0 0.0
    %143 = vmatpush1.msra.mxu0 0.0
    %144 = vmatprep.subr.mxu0 0.0
    %145 = vmatpush1.msra.mxu0 0.0
    %146 = vmatprep.subr.mxu0 0.0
    %147 = vmatpush1.msra.mxu0 0.0
    %148 = vmatprep.subr.mxu0 0.0
    %149 = vmatpush1.msra.mxu0 0.0
    %150 = vmatprep.subr.mxu0 0.0
    %151 = vmatpush1.msra.mxu0 0.0
    %152 = vmatprep.subr.mxu0 0.0
    %153 = vmatpush1.msra.mxu0 0.0
    %154 = vmatprep.subr.mxu0 0.0
    %155 = vmatpush1.msra.mxu0 0.0
    %156 = vmatprep.subr.mxu0 0.0
    %157 = vmatpush1.msra.mxu0 0.0
    %158 = vmatprep.subr.mxu0 0.0
    %159 = vmatpush1.msra.mxu0 0.0
    %160 = vmatprep.subr.mxu0 0.0
    %161 = vmatpush1.msra.mxu0 0.0
    %162 = vmatprep.subr.mxu0 0.0
    %163 = vmatpush1.msra.mxu0 0.0
    %164 = vmatprep.subr.mxu0 0.0
    %165 = vmatpush1.msra.mxu0 0.0
    %166 = vmatprep.subr.mxu0 0.0
    %167 = vmatpush1.msra.mxu0 0.0
    %168 = vmatprep.subr.mxu0 0.0
    %169 = vmatpush1.msra.mxu0 0.0
    %170 = vmatprep.subr.mxu0 0.0
    %171 = vmatpush1.msra.mxu0 0.0
    %172 = vmatprep.subr.mxu0 0.0
    %173 = vmatpush1.msra.mxu0 0.0
    %174 = vmatprep.subr.mxu0 0.0
    %175 = vmatpush1.msra.mxu0 0.0
    %176 = vmatprep.subr.mxu0 0.0
    %177 = vmatpush1.msra.mxu0 0.0
    %178 = vmatprep.subr.mxu0 0.0
    %179 = vmatpush1.msra.mxu0 0.0
    %180 = vmatprep.subr.mxu0 0.0
    %181 = vmatpush1.msra.mxu0 0.0
    %182 = vmatprep.mubr.f32.mxu0 0.0
    %183 = vmatmul.mubr.f32.gmra.mrb[0].mxu0 %v113
    %v184 = vpop.f32.mrb[0].mxu0
    %v185 = vadd.f32 0.0, %v184
    %v186 = vpop.f32.mrb[0].mxu0
    %187 = vdwg.mxu0
    %s188 = scalar_lea.vmem [#allocation4], 8
    %189 = vst.msk [vmem:[%s188] sm:$0xff] %vm103, %v185
    // Predicated region
    $region10: #{tpu_custom_call.1} parent=1 // pred_check
      _
    $region11: #{tpu_custom_call.1} parent=1 // pred_check_branch
      %191 = sbr.rel (0) target = $region13
    $region12: #{tpu_custom_call.1} parent=1 // pred_region
      %s193 = ssub.s32 256, 256
      %194 = vsyncadd [#allocation5], %s193
      %s195 = sshll.u32 [#allocation4], 4
      %s196 = int_to_ptr.vmem [resolvable:$true] %s195
      %201 = dma.vmem_to_hbm [thread:$0]  %s196, 256, %s3, [#allocation5], 128, 128, 8
    $region13: #{tpu_custom_call.1} parent=1 // pred_fallthru
      _
    // Predicated region
    $region14: #{tpu_custom_call.1} parent=1 // pred_check
      _
    $region15: #{tpu_custom_call.1} parent=1 // pred_check_branch
      %203 = sbr.rel (0) target = $region17
    $region16: #{tpu_custom_call.1} parent=1 // pred_region
      %204 = dma.done [#allocation5], 256
    $region17: #{tpu_custom_call.1} parent=1 // pred_fallthru
      _
    %205 = vsyncpa [#allocation5], 1

</llo_original>
